<compile_context>
chip_gen: v6e
topology: v6e:2x2x1
jax: 0.10.0
libtpu: 0.0.40
codegen_flags: <defaults>
</compile_context>

<pallas_src>
import functools

import jax
import jax.numpy as jnp
from jax.experimental import pallas as pl
from jax.experimental.pallas import tpu as pltpu


_VMEM_BUDGET = 24 * 1024 * 1024   # target for blocks + scratch + temporaries
_VMEM_LIMIT = 40 * 1024 * 1024    # scoped-VMEM request (safe on v5e/v6e/v7x)


# ---------------------------------------------------------------------------
# Kernel 1: fused QKV projection.  Grid: (B*N // tn,).
#   x2d (tn, C) @ w_fused (C, 3C)  ->  q/k/v stored lane-dense as (tn, C).
# ---------------------------------------------------------------------------
def _qkv_proj_kernel(x_ref, w_ref, q_ref, k_ref, v_ref):
    res = jnp.dot(x_ref[...], w_ref[...], preferred_element_type=jnp.float32)
    C = q_ref.shape[-1]
    q_ref[...] = res[:, :C].astype(q_ref.dtype)          # scale pre-folded
    k_ref[...] = res[:, C:2 * C].astype(k_ref.dtype)
    v_ref[...] = res[:, 2 * C:].astype(v_ref.dtype)


# ---------------------------------------------------------------------------
# Kernel 2: flash attention (all heads per block) + fused output projection.
# Grid: (B*N // tq, N // tk); kv tiles are the innermost reduction axis.
# Per-head online-softmax state in VMEM scratch:
#   m_sc, l_sc : (tq, H) f32     acc_sc : (tq, C) f32 (head h at cols h*D..)
# ---------------------------------------------------------------------------
def _flash_proj_kernel(q_ref, k_ref, v_ref, wp_ref, b_ref, o_ref,
                       m_sc, l_sc, acc_sc, oc_sc, *, num_heads, head_dim):
    H, D = num_heads, head_dim
    kv = pl.program_id(1)

    @pl.when(kv == 0)
    def _():
        m_sc[...] = jnp.full(m_sc.shape, -jnp.inf, jnp.float32)
        l_sc[...] = jnp.zeros(l_sc.shape, jnp.float32)
        acc_sc[...] = jnp.zeros(acc_sc.shape, jnp.float32)

    q = q_ref[...]                                   # (tq, C) bf16, pre-scaled
    k = k_ref[...]                                   # (tk, C) bf16
    v = v_ref[...]                                   # (tk, C) bf16
    ones_col = jnp.ones((k.shape[0], 1), dtype=v.dtype)

    for h in range(H):                               # static unroll over heads
        cs = slice(h * D, (h + 1) * D)               # this head's channels
        hs = slice(h, h + 1)                         # this head's state column

        # scores[i, j] = sum_d q[i, d] * k[j, d]  (MXU, f32 accumulation).
        s = jax.lax.dot_general(q[:, cs], k[:, cs], (((1,), (1,)), ((), ())),
                                preferred_element_type=jnp.float32)  # (tq, tk)

        m_prev = m_sc[:, hs]
        m_new = jnp.maximum(m_prev, jnp.max(s, axis=-1, keepdims=True))
        alpha = jnp.exp(m_prev - m_new)              # (tq, 1)
        p = jnp.exp(s - m_new)                       # (tq, tk) -- EUP-bound

        # PV matmul with a ones column folded onto v: the last output column
        # is the row-sum of p (no cross-lane XLU reduction needed).
        v_aug = jnp.concatenate([v[:, cs], ones_col], axis=-1)       # (tk, D+1)
        pv = jnp.dot(p.astype(v.dtype), v_aug,
                     preferred_element_type=jnp.float32)             # (tq, D+1)

        l_sc[:, hs] = alpha * l_sc[:, hs] + pv[:, D:D + 1]
        acc_sc[:, cs] = alpha * acc_sc[:, cs] + pv[:, :D]
        m_sc[:, hs] = m_new

    @pl.when(kv == pl.num_programs(1) - 1)
    def _():
        # Normalize each head (exact reciprocal, only (tq,1) elements) and
        # pack into a lane-dense (tq, C) buffer ...
        for h in range(H):
            cs = slice(h * D, (h + 1) * D)
            inv_l = 1.0 / l_sc[:, h:h + 1]
            oc_sc[:, cs] = (acc_sc[:, cs] * inv_l).astype(oc_sc.dtype)
        # ... then one full-depth output projection + bias, lane-dense store.
        res = jnp.dot(oc_sc[...], wp_ref[...],
                      preferred_element_type=jnp.float32)
        o_ref[...] = (res + b_ref[...]).astype(o_ref.dtype)


# ---------------------------------------------------------------------------
# Rough per-kernel VMEM estimates used to clamp tile sizes.
# ---------------------------------------------------------------------------
def _proj_vmem_bytes(tn, C):
    blocks = 2 * tn * C * 2 + 2 * C * 3 * C * 2 + 3 * 2 * tn * C * 2
    temps = tn * 3 * C * 4 + tn * 3 * C * 2
    return blocks + temps


def _flash_vmem_bytes(tq, tk, C, out_itemsize):
    blocks = (2 * tq * C * 2 + 2 * 2 * tk * C * 2 + 2 * C * C * 2
              + 2 * tq * C * out_itemsize + 2 * C * 4)
    scratch = tq * C * 4 + tq * C * 2 + 2 * tq * 128 * 4
    temps = 4 * tq * tk * 4                       # live s / p temporaries
    return blocks + scratch + temps


def attention_pallas(x, w_qkv, w_proj, b_proj, *, num_heads,
                     q_tile=512, kv_tile=1024, n_tile=512):
    """Self-attention forward (context=None) matching the PyTorch module.

    x:      (B, N, C)
    w_qkv:  (C, 3C)  -- transpose of torch nn.Linear weight (x @ W convention)
    w_proj: (C, C)
    b_proj: (1, C)
    """
    B, N, C = x.shape
    H = num_heads
    assert C % H == 0, "dim must be divisible by num_heads"
    D = C // H
    scale = D ** (-0.5)
    M = B * N
    out_itemsize = jnp.dtype(x.dtype).itemsize

    # --- tile selection: clamp to problem size, then to the VMEM budget ---
    tn = min(n_tile, M)
    tq = min(q_tile, N)
    tk = min(kv_tile, N)
    while _proj_vmem_bytes(tn, C) > _VMEM_BUDGET and tn >= 256:
        tn //= 2
    while _flash_vmem_bytes(tq, tk, C, out_itemsize) > _VMEM_BUDGET and tk >= 256:
        tk //= 2
    while _flash_vmem_bytes(tq, tk, C, out_itemsize) > _VMEM_BUDGET and tq >= 256:
        tq //= 2
    assert M % tn == 0 and N % tq == 0 and N % tk == 0, \
        "sequence length must be divisible by the (clamped) tile sizes"
    assert tn % 8 == 0 and tq % 8 == 0 and tk % 8 == 0, \
        "tile sizes must be sublane (8) aligned"

    # --- host-side prep: fold softmax scale into w_q columns, cast to bf16 ---
    w_fused = jnp.concatenate([w_qkv[:, :C] * scale, w_qkv[:, C:]],
                              axis=1).astype(jnp.bfloat16)             # (C, 3C)
    w_p = w_proj.astype(jnp.bfloat16)                                  # (C, C)
    b_p = b_proj.reshape(1, C).astype(jnp.float32)
    x2d = x.reshape(M, C).astype(jnp.bfloat16)

    # ---------------- 1) fused QKV projection ----------------
    q2d, k2d, v2d = pl.pallas_call(
        _qkv_proj_kernel,
        out_shape=(jax.ShapeDtypeStruct((M, C), jnp.bfloat16),) * 3,
        grid_spec=pltpu.PrefetchScalarGridSpec(
            num_scalar_prefetch=0,
            grid=(M // tn,),
            in_specs=[
                pl.BlockSpec((tn, C), lambda i: (i, 0)),
                pl.BlockSpec((C, 3 * C), lambda i: (0, 0)),      # resident
            ],
            out_specs=[pl.BlockSpec((tn, C), lambda i: (i, 0))] * 3,
        ),
        compiler_params=pltpu.CompilerParams(
            dimension_semantics=("parallel",),
            vmem_limit_bytes=_VMEM_LIMIT),
    )(x2d, w_fused)

    # -------- 2) flash attention + fused output projection --------
    n_q_blocks = N // tq
    n_kv_blocks = N // tk

    def q_map(i, ki):
        return (i, 0)

    def kv_map(i, ki):
        return ((i // n_q_blocks) * n_kv_blocks + ki, 0)

    out2d = pl.pallas_call(
        functools.partial(_flash_proj_kernel, num_heads=H, head_dim=D),
        out_shape=jax.ShapeDtypeStruct((M, C), x.dtype),
        grid_spec=pltpu.PrefetchScalarGridSpec(
            num_scalar_prefetch=0,
            grid=(M // tq, N // tk),
            in_specs=[
                pl.BlockSpec((tq, C), q_map),
                pl.BlockSpec((tk, C), kv_map),
                pl.BlockSpec((tk, C), kv_map),
                pl.BlockSpec((C, C), lambda i, ki: (0, 0)),       # resident
                pl.BlockSpec((1, C), lambda i, ki: (0, 0)),       # resident
            ],
            out_specs=pl.BlockSpec((tq, C), q_map),
            scratch_shapes=[
                pltpu.VMEM((tq, H), jnp.float32),    # running row max per head
                pltpu.VMEM((tq, H), jnp.float32),    # running denominator
                pltpu.VMEM((tq, C), jnp.float32),    # per-head output acc
                pltpu.VMEM((tq, C), jnp.bfloat16),   # packed normalized heads
            ],
        ),
        compiler_params=pltpu.CompilerParams(
            dimension_semantics=("parallel", "arbitrary"),
            vmem_limit_bytes=_VMEM_LIMIT),
    )(q2d, k2d, v2d, w_p, b_p)

    return out2d.reshape(B, N, C)


def attention_ref(x, w_qkv, w_proj, b_proj, *, num_heads):
    """Pure-JAX f32 reference matching the PyTorch forward (context=None)."""
    B, N, C = x.shape
    head_dim = C // num_heads
    scale = head_dim ** (-0.5)
    qkv = x @ w_qkv                                              # (B, N, 3C)
    qkv = qkv.reshape(B, N, 3, num_heads, head_dim).transpose(2, 0, 3, 1, 4)
    q, k, v = qkv[0], qkv[1], qkv[2]                             # (B, H, N, D)
    attn = (q @ jnp.swapaxes(k, -2, -1)) * scale
    attn = jax.nn.softmax(attn, axis=-1)
    out = (attn @ v).transpose(0, 2, 1, 3).reshape(B, N, C)
    return out @ w_proj + b_proj[0]


if __name__ == "__main__":
    # Small shapes consistent with the module: dim C divisible by num_heads.
    B, N, C = 2, 8, 32
    num_heads = 4
    dtype = jnp.float32

    key = jax.random.PRNGKey(0)
    kx, kqkv, kproj, kbias = jax.random.split(key, 4)

    x = jax.random.normal(kx, (B, N, C), dtype=dtype)
    # qkv_bias=False by default; proj has a bias.
    w_qkv = jax.random.normal(kqkv, (C, 3 * C), dtype=dtype) * 0.05
    w_proj = jax.random.normal(kproj, (C, C), dtype=dtype) * 0.05
    b_proj = jax.random.normal(kbias, (1, C), dtype=dtype) * 0.05

    out = attention_pallas(x, w_qkv, w_proj, b_proj, num_heads=num_heads)
    out = jax.block_until_ready(out)

    ref = attention_ref(x, w_qkv, w_proj, b_proj, num_heads=num_heads)
    assert out.shape == (B, N, C)
    max_err = float(jnp.max(jnp.abs(out - ref)))
    # bf16 MXU inputs -> loose (but tight-for-bf16) bound.
    assert max_err < 3e-2, f"mismatch vs reference: max abs err {max_err}"

    print("KERNEL_OK")
</pallas_src>

<mosaic_0001>
module attributes {stable_mosaic.version = 11 : i64} {
  func.func @_qkv_proj_kernel(%arg0: i32, %arg1: memref<16x32xbf16, #tpu.memory_space<vmem>>, %arg2: memref<32x96xbf16, #tpu.memory_space<vmem>>, %arg3: memref<16x32xbf16, #tpu.memory_space<vmem>>, %arg4: memref<16x32xbf16, #tpu.memory_space<vmem>>, %arg5: memref<16x32xbf16, #tpu.memory_space<vmem>>) attributes {dimension_semantics = [#tpu.dimension_semantics<parallel>], iteration_bounds = array<i64: 1>, scalar_prefetch = 0 : i64, scratch_operands = 0 : i64, tpu.core_type = #tpu.core_type<tc>, window_params = [{transform_indices = @transform_0, window_bounds = array<i64: 16, 32>}, {pipeline_mode = #tpu.pipeline_mode<synchronous>, transform_indices = @transform_1, window_bounds = array<i64: 32, 96>}, {transform_indices = @transform_2, window_bounds = array<i64: 16, 32>}, {transform_indices = @transform_3, window_bounds = array<i64: 16, 32>}, {transform_indices = @transform_4, window_bounds = array<i64: 16, 32>}]} {
    %c0 = arith.constant 0 : index
    %c0_0 = arith.constant 0 : index
    %0 = vector.load %arg1[%c0, %c0_0] : memref<16x32xbf16, #tpu.memory_space<vmem>>, vector<16x32xbf16>
    %c0_1 = arith.constant 0 : index
    %c0_2 = arith.constant 0 : index
    %1 = vector.load %arg2[%c0_1, %c0_2] : memref<32x96xbf16, #tpu.memory_space<vmem>>, vector<32x96xbf16>
    %cst = arith.constant dense<0.000000e+00> : vector<16x96xf32>
    %2 = tpu.matmul %0, %1, %cst {dimension_numbers = #tpu.dot_dimension_numbers<[1], [0], [0], [1], [0, 0, 1, 1], [], []>} : vector<16x32xbf16>, vector<32x96xbf16>, vector<16x96xf32> -> vector<16x96xf32>
    %3 = vector.extract_strided_slice %2 {offsets = [0, 0], sizes = [16, 32], strides = [1, 1]} : vector<16x96xf32> to vector<16x32xf32>
    %4 = arith.truncf %3 : vector<16x32xf32> to vector<16x32xbf16>
    %c0_3 = arith.constant 0 : index
    %c0_4 = arith.constant 0 : index
    %5 = vector.load %arg3[%c0_3, %c0_4] : memref<16x32xbf16, #tpu.memory_space<vmem>>, vector<16x32xbf16>
    tpu.vector_store %arg3[%c0_3, %c0_4], %4 {strides = array<i32>} : memref<16x32xbf16, #tpu.memory_space<vmem>>, vector<16x32xbf16>,
    %6 = vector.extract_strided_slice %2 {offsets = [0, 32], sizes = [16, 32], strides = [1, 1]} : vector<16x96xf32> to vector<16x32xf32>
    %7 = arith.truncf %6 : vector<16x32xf32> to vector<16x32xbf16>
    %c0_5 = arith.constant 0 : index
    %c0_6 = arith.constant 0 : index
    %8 = vector.load %arg4[%c0_5, %c0_6] : memref<16x32xbf16, #tpu.memory_space<vmem>>, vector<16x32xbf16>
    tpu.vector_store %arg4[%c0_5, %c0_6], %7 {strides = array<i32>} : memref<16x32xbf16, #tpu.memory_space<vmem>>, vector<16x32xbf16>,
    %9 = vector.extract_strided_slice %2 {offsets = [0, 64], sizes = [16, 32], strides = [1, 1]} : vector<16x96xf32> to vector<16x32xf32>
    %10 = arith.truncf %9 : vector<16x32xf32> to vector<16x32xbf16>
    %c0_7 = arith.constant 0 : index
    %c0_8 = arith.constant 0 : index
    %11 = vector.load %arg5[%c0_7, %c0_8] : memref<16x32xbf16, #tpu.memory_space<vmem>>, vector<16x32xbf16>
    tpu.vector_store %arg5[%c0_7, %c0_8], %10 {strides = array<i32>} : memref<16x32xbf16, #tpu.memory_space<vmem>>, vector<16x32xbf16>,
    return
  }
  func.func @transform_0(%arg0: i32) -> (i32, i32) {
    %c0_i32 = arith.constant 0 : i32
    %c0_i32_0 = arith.constant 0 : i32
    return %arg0, %c0_i32 : i32, i32
  }
  func.func @transform_1(%arg0: i32) -> (i32, i32) {
    %c0_i32 = arith.constant 0 : i32
    %c0_i32_0 = arith.constant 0 : i32
    %c0_i32_1 = arith.constant 0 : i32
    return %c0_i32, %c0_i32_0 : i32, i32
  }
  func.func @transform_2(%arg0: i32) -> (i32, i32) {
    %c0_i32 = arith.constant 0 : i32
    %c0_i32_0 = arith.constant 0 : i32
    return %arg0, %c0_i32 : i32, i32
  }
  func.func @transform_3(%arg0: i32) -> (i32, i32) {
    %c0_i32 = arith.constant 0 : i32
    %c0_i32_0 = arith.constant 0 : i32
    return %arg0, %c0_i32 : i32, i32
  }
  func.func @transform_4(%arg0: i32) -> (i32, i32) {
    %c0_i32 = arith.constant 0 : i32
    %c0_i32_0 = arith.constant 0 : i32
    return %arg0, %c0_i32 : i32, i32
  }
}

</mosaic_0001>

<llo_original>
// kernel: tpu_custom_call.1
$region0: #{tpu_custom_call.1}
  #allocation0 [shape = 'u32[]', space=smem, size = 0x4, offset = 0x4, fixed_abs, tag = 'smem constant byte address 0x4 - core index']
  #allocation1 [shape = 'u32[144,128]{1,0:T(1,128)}', space=vmem, size = 0x12000, scoped, tag = 'internal scratch']
  %s0 = inlined_call_operand.hbm [shape: bf16[16,32], index: 0, kind: input, shape index: {}]
  %s1 = inlined_call_operand.hbm [shape: bf16[32,96], index: 1, kind: input, shape index: {}]
  %s2 = inlined_call_operand.hbm [shape: bf16[16,32], index: 2, kind: output, shape index: {0}]
  %s3 = inlined_call_operand.hbm [shape: bf16[16,32], index: 3, kind: output, shape index: {1}]
  %s4 = inlined_call_operand.hbm [shape: bf16[16,32], index: 4, kind: output, shape index: {2}]
  %5 = xla_tuple %s2, %s3, %s4
  %s6 = sld [smem:[#allocation0]]
  $region42: #{tpu_custom_call.1} parent=0
    _
  %s8 = ssub.s32 1, %s6
  %s9 = scalar_select 0, %s8, %s6
  $region1: #{tpu_custom_call.1} parent=0
    #allocation2 [shape = 'u8[4096]{0}', space=vmem, size = 0x1000, scoped, tag = 'input window, operand 0, single buffered']
    #allocation3 [shape = 's32[1]{0}', space=sflag, size = 0x4, scoped, tag = 'scoped memory for tpu_custom_call.1']
    #allocation4 [shape = 's32[1]{0}', space=sflag, size = 0x4, scoped, tag = 'scoped memory for tpu_custom_call.1']
    #allocation5 [shape = 'u8[8192]{0}', space=vmem, size = 0x2000, scoped, tag = 'input window, operand 1, single buffered']
    #allocation6 [shape = 's32[1]{0}', space=sflag, size = 0x4, scoped, tag = 'scoped memory for tpu_custom_call.1']
    #allocation7 [shape = 'u8[4096]{0}', space=vmem, size = 0x1000, scoped, tag = 'output window, operand 0, single buffered']
    #allocation8 [shape = 'u8[4096]{0}', space=vmem, size = 0x1000, scoped, tag = 'output window, operand 1, single buffered']
    #allocation9 [shape = 's32[1]{0}', space=sflag, size = 0x4, scoped, tag = 'scoped memory for tpu_custom_call.1']
    #allocation10 [shape = 'u8[4096]{0}', space=vmem, size = 0x1000, scoped, tag = 'output window, operand 2, single buffered']
    %10 = vsyncpa [#allocation3], 0
    %11 = vsyncpa [#allocation6], 0
    %12 = vsyncpa [#allocation4], 0
    %13 = vsyncpa [#allocation9], 0
    // Predicated region
    $region2: #{tpu_custom_call.1} parent=1 // pred_check
      _
    $region3: #{tpu_custom_call.1} parent=1 // pred_check_branch
      %15 = sbr.rel (0) target = $region5
    $region4: #{tpu_custom_call.1} parent=1 // pred_region
      %s17 = ssub.s32 128, 128
      %18 = vsyncadd [#allocation3], %s17
      %s19 = sshll.u32 [#allocation2], 4
      %s20 = int_to_ptr.vmem [resolvable:$true] %s19
      %25 = dma.hbm_to_vmem [thread:$0]  %s0, 128, %s20, [#allocation3], 64, 64, 4
    $region5: #{tpu_custom_call.1} parent=1 // pred_fallthru
      _
    // Predicated region
    $region6: #{tpu_custom_call.1} parent=1 // pred_check
      _
    $region7: #{tpu_custom_call.1} parent=1 // pred_check_branch
      %27 = sbr.rel (0) target = $region9
    $region8: #{tpu_custom_call.1} parent=1 // pred_region
      %s29 = ssub.s32 256, 256
      %30 = vsyncadd [#allocation6], %s29
      %s31 = sshll.u32 [#allocation5], 4
      %s32 = int_to_ptr.vmem [resolvable:$true] %s31
      %37 = dma.hbm_to_vmem [thread:$0]  %s1, 256, %s32, [#allocation6], 64, 64, 4
    $region9: #{tpu_custom_call.1} parent=1 // pred_fallthru
      _
    // Predicated region
    $region10: #{tpu_custom_call.1} parent=1 // pred_check
      _
    $region11: #{tpu_custom_call.1} parent=1 // pred_check_branch
      %39 = sbr.rel (0) target = $region13
    $region12: #{tpu_custom_call.1} parent=1 // pred_region
      %40 = dma.done [#allocation3], 128
    $region13: #{tpu_custom_call.1} parent=1 // pred_fallthru
      _
    // Predicated region
    $region14: #{tpu_custom_call.1} parent=1 // pred_check
      _
    $region15: #{tpu_custom_call.1} parent=1 // pred_check_branch
      %42 = sbr.rel (0) target = $region17
    $region16: #{tpu_custom_call.1} parent=1 // pred_region
      %43 = dma.done [#allocation6], 256
    $region17: #{tpu_custom_call.1} parent=1 // pred_fallthru
      _
    %v45 = vld [vmem:[#allocation2] sm:$0xf]
    %v46 = vld [vmem:[#allocation2 + $0x4] sm:$0xf]
    %v47 = vld [vmem:[#allocation5] sm:$0xf]
    %v48 = vld [vmem:[#allocation5 + $0x4] sm:$0xf]
    %v49 = vld [vmem:[#allocation5 + $0x8] sm:$0xf]
    %v50 = vld [vmem:[#allocation5 + $0xc] sm:$0xf]
    %v53 = vunpack.c.l.b16 %v45
    %v54 = vunpack.c.l.b16 %v46
    %v55 = vpack.c.b16 %v54, %v53
    %v60 = vunpack.c.l.b16 %v47
    %v61 = vunpack.c.l.b16 %v48
    %v62 = vunpack.c.l.b16 %v49
    %v63 = vunpack.c.l.b16 %v50
    %v64 = vpack.c.b16 %v61, %v60
    %v65 = vpack.c.b16 %v63, %v62
    %vm68 = vcmask 261120
    %v70 = vsel %vm68, %v55, 0
    %72 = vmatprep.subr.bf16.mxu0 0
    %73 = vmatpush1.bf16.msra.mxu0 0
    %74 = vmatprep.subr.bf16.mxu0 0
    %75 = vmatpush1.bf16.msra.mxu0 0
    %76 = vmatprep.subr.bf16.mxu0 0
    %77 = vmatpush1.bf16.msra.mxu0 0
    %78 = vmatprep.subr.bf16.mxu0 0
    %79 = vmatpush1.bf16.msra.mxu0 0
    %80 = vmatprep.subr.bf16.mxu0 0
    %81 = vmatpush1.bf16.msra.mxu0 0
    %82 = vmatprep.subr.bf16.mxu0 0
    %83 = vmatpush1.bf16.msra.mxu0 0
    %84 = vmatprep.subr.bf16.mxu0 0
    %85 = vmatpush1.bf16.msra.mxu0 %v65
    %86 = vmatprep.subr.bf16.mxu0 0
    %87 = vmatpush1.bf16.msra.mxu0 %v64
    %88 = vmatprep.subr.bf16.mxu0 0
    %89 = vmatpush2.bf16.msra.mxu0 0
    %90 = vmatprep.subr.bf16.mxu0 0
    %91 = vmatpush2.bf16.msra.mxu0 0
    %92 = vmatprep.subr.bf16.mxu0 0
    %93 = vmatpush2.bf16.msra.mxu0 0
    %94 = vmatprep.subr.bf16.mxu0 0
    %95 = vmatpush2.bf16.msra.mxu0 0
    %96 = vmatprep.subr.bf16.mxu0 0
    %97 = vmatpush2.bf16.msra.mxu0 0
    %98 = vmatprep.subr.bf16.mxu0 0
    %99 = vmatpush2.bf16.msra.mxu0 0
    %100 = vmatprep.subr.bf16.mxu0 0
    %101 = vmatpush2.bf16.msra.mxu0 0
    %102 = vmatprep.subr.bf16.mxu0 0
    %103 = vmatpush2.bf16.msra.mxu0 0
    %104 = vmatprep.mubr.bf16.mxu0 0
    %105 = vmatmul.mubr.bf16.gmra.mxu0 %v70
    %v106 = vpop.f32.mrf.mxu0
    %v107 = vadd.f32 0.0, %v106
    %v108 = vpop.f32.mrf.mxu0
    %v109 = vpop.f32.mrf.mxu0
    %v110 = vadd.f32 0.0, %v109
    %v111 = vpop.f32.mrf.mxu0
    %112 = vdwg.mxu0
    %v113 = vpack.c.bf16 %v110, %v107
    %v115 = vunpack.c.l.b16 %v113
    %v116 = vunpack.c.h.b16 %v113
    %v117 = vpack.c.b16 %v115, %v115
    %v118 = vpack.c.b16 %v116, %v116
    %vm121 = vcmask 257024
    %122 = vst.msk [vmem:[#allocation7] sm:$0xf] %vm121, %v117
    %123 = vst.msk [vmem:[#allocation7 + $0x4] sm:$0xf] %vm121, %v118
    %124 = vrot.lane.b32.xlu0 %v117, 96
    %v125 = vpop.permute.xlu0 %124
    %126 = vrot.lane.b32.xlu0 %v118, 96
    %v127 = vpop.permute.xlu0 %126
    %130 = vst.msk [vmem:[#allocation8] sm:$0xf] %vm121, %v125
    %131 = vst.msk [vmem:[#allocation8 + $0x4] sm:$0xf] %vm121, %v127
    %132 = vrot.lane.b32.xlu0 %v117, 64
    %v133 = vpop.permute.xlu0 %132
    %134 = vrot.lane.b32.xlu0 %v118, 64
    %v135 = vpop.permute.xlu0 %134
    %138 = vst.msk [vmem:[#allocation10] sm:$0xf] %vm121, %v133
    %139 = vst.msk [vmem:[#allocation10 + $0x4] sm:$0xf] %vm121, %v135
    // Predicated region
    $region18: #{tpu_custom_call.1} parent=1 // pred_check
      _
    $region19: #{tpu_custom_call.1} parent=1 // pred_check_branch
      %141 = sbr.rel (0) target = $region21
    $region20: #{tpu_custom_call.1} parent=1 // pred_region
      %s143 = ssub.s32 128, 128
      %144 = vsyncadd [#allocation4], %s143
      %s145 = sshll.u32 [#allocation7], 4
      %s146 = int_to_ptr.vmem [resolvable:$true] %s145
      %151 = dma.vmem_to_hbm [thread:$0]  %s146, 128, %s2, [#allocation4], 64, 64, 4
    $region21: #{tpu_custom_call.1} parent=1 // pred_fallthru
      _
    // Predicated region
    $region22: #{tpu_custom_call.1} parent=1 // pred_check
      _
    $region23: #{tpu_custom_call.1} parent=1 // pred_check_branch
      %153 = sbr.rel (0) target = $region25
    $region24: #{tpu_custom_call.1} parent=1 // pred_region
      %s155 = ssub.s32 128, 128
      %156 = vsyncadd [#allocation9], %s155
      %s157 = sshll.u32 [#allocation8], 4
      %s158 = int_to_ptr.vmem [resolvable:$true] %s157
      %163 = dma.vmem_to_hbm [thread:$0]  %s158, 128, %s3, [#allocation9], 64, 64, 4
    $region25: #{tpu_custom_call.1} parent=1 // pred_fallthru
      _
    // Predicated region
    $region26: #{tpu_custom_call.1} parent=1 // pred_check
      _
    $region27: #{tpu_custom_call.1} parent=1 // pred_check_branch
      %165 = sbr.rel (0) target = $region29
    $region28: #{tpu_custom_call.1} parent=1 // pred_region
      %s167 = ssub.s32 128, 128
      %168 = vsyncadd [#allocation9], %s167
      %s169 = sshll.u32 [#allocation10], 4
      %s170 = int_to_ptr.vmem [resolvable:$true] %s169
      %175 = dma.vmem_to_hbm [thread:$0]  %s170, 128, %s4, [#allocation9], 64, 64, 4
    $region29: #{tpu_custom_call.1} parent=1 // pred_fallthru
      _
    // Predicated region
    $region30: #{tpu_custom_call.1} parent=1 // pred_check
      _
    $region31: #{tpu_custom_call.1} parent=1 // pred_check_branch
      %177 = sbr.rel (0) target = $region33
    $region32: #{tpu_custom_call.1} parent=1 // pred_region
      %178 = dma.done [#allocation4], 128
    $region33: #{tpu_custom_call.1} parent=1 // pred_fallthru
      _
    // Predicated region
    $region34: #{tpu_custom_call.1} parent=1 // pred_check
      _
    $region35: #{tpu_custom_call.1} parent=1 // pred_check_branch
      %180 = sbr.rel (0) target = $region37
    $region36: #{tpu_custom_call.1} parent=1 // pred_region
      %181 = dma.done [#allocation9], 128
    $region37: #{tpu_custom_call.1} parent=1 // pred_fallthru
      _
    // Predicated region
    $region38: #{tpu_custom_call.1} parent=1 // pred_check
      _
    $region39: #{tpu_custom_call.1} parent=1 // pred_check_branch
      %183 = sbr.rel (0) target = $region41
    $region40: #{tpu_custom_call.1} parent=1 // pred_region
      %184 = dma.done [#allocation9], 128
    $region41: #{tpu_custom_call.1} parent=1 // pred_fallthru
      _
    %185 = vsyncpa [#allocation3], 1
    %186 = vsyncpa [#allocation6], 1
    %187 = vsyncpa [#allocation4], 1
    %188 = vsyncpa [#allocation9], 1

</llo_original>
